<compile_context>
chip_gen: v7x
topology: tpu7x:2x2x1
jax: 0.10.0
libtpu: 0.0.40
codegen_flags: <defaults>
</compile_context>

<pallas_src>
import jax
import jax.numpy as jnp
from jax.experimental import pallas as pl
from jax.experimental.pallas import tpu as pltpu

EMB_DIM = 16
NUM_FIELDS = 4                      # user_id, item_id, category, brand ("price" has dim 0)
MLP_IN = EMB_DIM * NUM_FIELDS       # 64
H1, H2 = 64, 32

FIELD_NAMES = ("user_id", "item_id", "category", "brand")
FIELD_DIMS = {"user_id": 50, "item_id": 40, "category": 12, "brand": 20}


def _round_up(x, m):
    return ((x + m - 1) // m) * m


def deepfm_kernel(idx_ref, price_ref, wfused_ref, b1_ref, w2t_ref, b2_ref,
                  w3_ref, bias_ref, out_ref):
    # idx_ref:   (4, tb)   int32 — offset-adjusted vocab indices, batch on lanes
    # price_ref: (1, tb)   f32   — lane-dense price row
    # wfused:    (88, 128) bf16  — rows 0:64 = (table@w1)^T, 64:80 = (table@pmat)^T,
    #                              80 = per-vocab-row ||e||^2, 81:88 = zero pad
    # b1: (64,1) f32   w2t: (32,64) bf16   b2: (32,1) f32   w3: (1,32) f32
    # bias_ref:  (1,) f32 in SMEM — fm_bias + b3 folded into one scalar
    # out_ref:   (1, tb) f32 — lane-dense output row
    tb = idx_ref.shape[1]
    vpad = wfused_ref.shape[1]                                           # 128

    # Transposed one-hot gather matrix: onehot[v, b] = 1 iff vocab row v is one of
    # the 4 selected rows for batch element b (fields are disjoint after offsets).
    idx = idx_ref[...]                                                   # (4, tb)
    rows = jax.lax.broadcasted_iota(jnp.int32, (vpad, tb), 0)
    onehot = ((rows == idx[0:1, :]) | (rows == idx[1:2, :]) |
              (rows == idx[2:3, :]) | (rows == idx[3:4, :])).astype(jnp.bfloat16)

    # One fused MXU matmul: gather + Linear(64,64) + FM field-sum + FM sum-of-squares.
    big = jnp.dot(wfused_ref[...], onehot,
                  preferred_element_type=jnp.float32)                    # (88, tb)
    h1_pre = big[0:H1, :]                                                # (64, tb)
    s = big[H1:H1 + EMB_DIM, :]                                          # (16, tb) sum_f e_f
    t2 = big[H1 + EMB_DIM:H1 + EMB_DIM + 1, :]                           # (1, tb)  sum_f ||e_f||^2

    # FM second-order term: 0.5 * (||sum_f e_f||^2 - sum_f ||e_f||^2).
    t1 = jnp.sum(s * s, axis=0, keepdims=True)                           # (1, tb)
    fm = 0.5 * (t1 - t2)

    # Deep MLP: ReLU -> Linear(64,32)+ReLU -> Linear(32,1), all lane-dense.
    h1 = jnp.maximum(h1_pre + b1_ref[...], 0.0)                          # (64, tb)
    h2 = jnp.maximum(jnp.dot(w2t_ref[...], h1.astype(jnp.bfloat16),
                             preferred_element_type=jnp.float32)
                     + b2_ref[...], 0.0)                                 # (32, tb)
    deep = jnp.dot(w3_ref[...], h2, preferred_element_type=jnp.float32)  # (1, tb)

    out_ref[...] = fm + deep + price_ref[...] + bias_ref[0]


def deepfm_forward(params, x_cat, price, *, tb=4096):
    B = price.shape[0]

    # ---- batch tiling: 128-aligned, large tiles, >= 2 tiles when possible ------
    bp128 = _round_up(B, 128)
    tb = max(128, min(_round_up(tb, 128), bp128))
    if tb >= bp128 and bp128 >= 256:
        tb = _round_up(bp128 // 2, 128)        # >= 2 tiles so the "parallel" grid
    n_tiles = pl.cdiv(bp128, tb)               # axis can feed both v7x TensorCores
    bp = n_tiles * tb

    # ---- stacked block-diagonal embedding table + fused weight ------------------
    dims = [FIELD_DIMS[n] for n in FIELD_NAMES]
    offs, acc = [], 0
    for d in dims:
        offs.append(acc)
        acc += d
    total = acc
    vpad = _round_up(total, 128)                                         # 128 here

    blocks = []
    for f, name in enumerate(FIELD_NAMES):
        t = params["emb"][name].astype(jnp.float32)                      # (dim_f, 16)
        blocks.append(jnp.pad(t, ((0, 0), (f * EMB_DIM, MLP_IN - (f + 1) * EMB_DIM))))
    table = jnp.concatenate(blocks, axis=0)                              # (total, 64)
    table = jnp.pad(table, ((0, vpad - total), (0, 0)))                  # (128, 64)

    pmat = jnp.tile(jnp.eye(EMB_DIM, dtype=jnp.float32), (NUM_FIELDS, 1))  # (64, 16)
    w1p = jnp.concatenate([params["w1"].astype(jnp.float32), pmat], axis=1)  # (64, 80)
    fused = (table @ w1p).T                                              # (80, 128)
    rowsq = jnp.sum(table * table, axis=1, keepdims=True).T              # (1, 128)
    wfused = jnp.concatenate([fused, rowsq], axis=0)                     # (81, 128)
    mrows = _round_up(wfused.shape[0], 8)                                # 88
    wfused = jnp.pad(wfused, ((0, mrows - wfused.shape[0]), (0, 0))).astype(jnp.bfloat16)

    # ---- per-row streams: indices (lane-dense) + price --------------------------
    idx = jnp.stack([x_cat[f].astype(jnp.int32) + offs[f]
                     for f in range(NUM_FIELDS)], axis=0)                # (4, B)
    idx = jnp.pad(idx, ((0, 0), (0, bp - B)))                            # (4, bp)
    price_row = jnp.pad(price.astype(jnp.float32), (0, bp - B)).reshape(1, bp)

    b1c = params["b1"].reshape(H1, 1).astype(jnp.float32)
    w2t = params["w2"].T.astype(jnp.bfloat16)                            # (32, 64)
    b2c = params["b2"].reshape(H2, 1).astype(jnp.float32)
    w3r = params["w3"].reshape(1, H2).astype(jnp.float32)
    bias = (params["fm_bias"] + params["b3"]).reshape(1).astype(jnp.float32)

    out = pl.pallas_call(
        deepfm_kernel,
        out_shape=jax.ShapeDtypeStruct((1, bp), jnp.float32),
        grid_spec=pltpu.PrefetchScalarGridSpec(
            num_scalar_prefetch=0,
            grid=(n_tiles,),
            in_specs=[
                pl.BlockSpec((NUM_FIELDS, tb), lambda i: (0, i)),        # indices
                pl.BlockSpec((1, tb), lambda i: (0, i)),                 # price
                pl.BlockSpec((mrows, vpad), lambda i: (0, 0)),           # fused table/w1/pmat/rowsq
                pl.BlockSpec((H1, 1), lambda i: (0, 0)),                 # b1
                pl.BlockSpec((H2, H1), lambda i: (0, 0)),                # w2^T
                pl.BlockSpec((H2, 1), lambda i: (0, 0)),                 # b2
                pl.BlockSpec((1, H2), lambda i: (0, 0)),                 # w3 row
                pl.BlockSpec(memory_space=pltpu.MemorySpace.SMEM),       # fm_bias + b3
            ],
            out_specs=pl.BlockSpec((1, tb), lambda i: (0, i)),           # lane-dense output
        ),
        compiler_params=pltpu.CompilerParams(
            dimension_semantics=("parallel",),
            # 32 MiB is safe on every generation (half of v7x's 64 MiB VMEM);
            # intermediates at tb=8192 stay ~11 MiB, so there is ample headroom.
            vmem_limit_bytes=32 * 1024 * 1024,
        ),
    )(idx, price_row, wfused, b1c, w2t, b2c, w3r, bias)
    return out.reshape(bp)[:B]                                           # (B,) — matches .squeeze(1)


def make_params(key):
    keys = jax.random.split(key, 8)
    emb = {
        name: 0.1 * jax.random.normal(keys[i], (FIELD_DIMS[name], EMB_DIM), jnp.float32)
        for i, name in enumerate(FIELD_NAMES)
    }
    w1 = 0.05 * jax.random.normal(keys[4], (MLP_IN, H1), jnp.float32)
    w2 = 0.05 * jax.random.normal(keys[5], (H1, H2), jnp.float32)
    w3 = 0.05 * jax.random.normal(keys[6], (H2, 1), jnp.float32)
    b1 = 0.01 * jax.random.normal(keys[7], (1, H1), jnp.float32)
    b2 = jnp.zeros((1, H2), jnp.float32)
    b3 = jnp.zeros((1, 1), jnp.float32)
    fm_bias = jnp.zeros((1, 1), jnp.float32)   # nn.Parameter(torch.zeros(1))
    return dict(emb=emb, w1=w1, b1=b1, w2=w2, b2=b2, w3=w3, b3=b3, fm_bias=fm_bias)


def deepfm_reference(params, x_cat, price):
    # Pure-JAX f32 reference mirroring the PyTorch forward exactly.
    emb_list = [params["emb"][name][x_cat[i]] for i, name in enumerate(FIELD_NAMES)]
    fm = jnp.zeros_like(emb_list[0])
    for i in range(NUM_FIELDS):
        for j in range(NUM_FIELDS):
            if i < j:
                fm = fm + emb_list[i] * emb_list[j]
    x_mlp = jnp.concatenate(emb_list, axis=-1)
    h1 = jnp.maximum(x_mlp @ params["w1"] + params["b1"], 0.0)
    h2 = jnp.maximum(h1 @ params["w2"] + params["b2"], 0.0)
    deep = h2 @ params["w3"] + params["b3"]
    out = params["fm_bias"] + jnp.sum(fm, axis=1, keepdims=True) + deep + price[:, None]
    return out[:, 0]


if __name__ == "__main__":
    key = jax.random.PRNGKey(0)
    k_params, k_u, k_i, k_c, k_b, k_p = jax.random.split(key, 6)
    params = make_params(k_params)

    B = 128  # mirrors df.sample(n=128)
    x_cat = [
        jax.random.randint(k_u, (B,), 0, FIELD_DIMS["user_id"], dtype=jnp.int32),
        jax.random.randint(k_i, (B,), 0, FIELD_DIMS["item_id"], dtype=jnp.int32),
        jax.random.randint(k_c, (B,), 0, FIELD_DIMS["category"], dtype=jnp.int32),
        jax.random.randint(k_b, (B,), 0, FIELD_DIMS["brand"], dtype=jnp.int32),
    ]
    price = jax.random.normal(k_p, (B,), jnp.float32)

    out = deepfm_forward(params, x_cat, price)
    out = jax.block_until_ready(out)

    ref = deepfm_reference(params, x_cat, price)
    assert out.shape == (B,)
    max_err = float(jnp.max(jnp.abs(out - ref)))
    # bf16 fused table / weight feeds -> loosened tolerance vs the f32 reference.
    assert jnp.allclose(out, ref, atol=2e-2, rtol=2e-2), max_err

    print("KERNEL_OK")
</pallas_src>

<mosaic_0001>
module attributes {stable_mosaic.version = 11 : i64} {
  func.func @deepfm_kernel(%arg0: i32, %arg1: memref<4x128xi32, #tpu.memory_space<vmem>>, %arg2: memref<1x128xf32, #tpu.memory_space<vmem>>, %arg3: memref<88x128xbf16, #tpu.memory_space<vmem>>, %arg4: memref<64x1xf32, #tpu.memory_space<vmem>>, %arg5: memref<32x64xbf16, #tpu.memory_space<vmem>>, %arg6: memref<32x1xf32, #tpu.memory_space<vmem>>, %arg7: memref<1x32xf32, #tpu.memory_space<vmem>>, %arg8: memref<1xf32, #tpu.memory_space<smem>>, %arg9: memref<1x128xf32, #tpu.memory_space<vmem>>) attributes {dimension_semantics = [#tpu.dimension_semantics<parallel>], iteration_bounds = array<i64: 1>, scalar_prefetch = 0 : i64, scratch_operands = 0 : i64, tpu.core_type = #tpu.core_type<tc>, window_params = [{transform_indices = @transform_0, window_bounds = array<i64: 4, 128>}, {transform_indices = @transform_1, window_bounds = array<i64: 1, 128>}, {pipeline_mode = #tpu.pipeline_mode<synchronous>, transform_indices = @transform_2, window_bounds = array<i64: 88, 128>}, {pipeline_mode = #tpu.pipeline_mode<synchronous>, transform_indices = @transform_3, window_bounds = array<i64: 64, 1>}, {pipeline_mode = #tpu.pipeline_mode<synchronous>, transform_indices = @transform_4, window_bounds = array<i64: 32, 64>}, {pipeline_mode = #tpu.pipeline_mode<synchronous>, transform_indices = @transform_5, window_bounds = array<i64: 32, 1>}, {pipeline_mode = #tpu.pipeline_mode<synchronous>, transform_indices = @transform_6, window_bounds = array<i64: 1, 32>}, {transform_indices = @transform_7, window_bounds = array<i64: 1>}, {transform_indices = @transform_8, window_bounds = array<i64: 1, 128>}]} {
    %c0 = arith.constant 0 : index
    %c0_0 = arith.constant 0 : index
    %0 = vector.load %arg1[%c0, %c0_0] : memref<4x128xi32, #tpu.memory_space<vmem>>, vector<4x128xi32>
    %1 = tpu.iota {dimensions = array<i32: 0>} : vector<128x128xi32>
    %2 = vector.extract_strided_slice %0 {offsets = [0, 0], sizes = [1, 128], strides = [1, 1]} : vector<4x128xi32> to vector<1x128xi32>
    %3 = vector.broadcast %2 : vector<1x128xi32> to vector<128x128xi32>
    %4 = arith.cmpi eq, %1, %3 : vector<128x128xi32>
    %5 = vector.extract_strided_slice %0 {offsets = [1, 0], sizes = [1, 128], strides = [1, 1]} : vector<4x128xi32> to vector<1x128xi32>
    %6 = vector.broadcast %5 : vector<1x128xi32> to vector<128x128xi32>
    %7 = arith.cmpi eq, %1, %6 : vector<128x128xi32>
    %8 = arith.ori %4, %7 : vector<128x128xi1>
    %9 = vector.extract_strided_slice %0 {offsets = [2, 0], sizes = [1, 128], strides = [1, 1]} : vector<4x128xi32> to vector<1x128xi32>
    %10 = vector.broadcast %9 : vector<1x128xi32> to vector<128x128xi32>
    %11 = arith.cmpi eq, %1, %10 : vector<128x128xi32>
    %12 = arith.ori %8, %11 : vector<128x128xi1>
    %13 = vector.extract_strided_slice %0 {offsets = [3, 0], sizes = [1, 128], strides = [1, 1]} : vector<4x128xi32> to vector<1x128xi32>
    %14 = vector.broadcast %13 : vector<1x128xi32> to vector<128x128xi32>
    %15 = arith.cmpi eq, %1, %14 : vector<128x128xi32>
    %16 = arith.ori %12, %15 : vector<128x128xi1>
    %17 = arith.extui %16 : vector<128x128xi1> to vector<128x128xi32>
    %18 = arith.sitofp %17 : vector<128x128xi32> to vector<128x128xf32>
    %19 = arith.truncf %18 : vector<128x128xf32> to vector<128x128xbf16>
    %c0_1 = arith.constant 0 : index
    %c0_2 = arith.constant 0 : index
    %20 = vector.load %arg3[%c0_1, %c0_2] : memref<88x128xbf16, #tpu.memory_space<vmem>>, vector<88x128xbf16>
    %cst = arith.constant dense<0.000000e+00> : vector<88x128xf32>
    %21 = tpu.matmul %20, %19, %cst {dimension_numbers = #tpu.dot_dimension_numbers<[1], [0], [0], [1], [0, 0, 1, 1], [], []>} : vector<88x128xbf16>, vector<128x128xbf16>, vector<88x128xf32> -> vector<88x128xf32>
    %22 = vector.extract_strided_slice %21 {offsets = [0, 0], sizes = [64, 128], strides = [1, 1]} : vector<88x128xf32> to vector<64x128xf32>
    %23 = vector.extract_strided_slice %21 {offsets = [64, 0], sizes = [16, 128], strides = [1, 1]} : vector<88x128xf32> to vector<16x128xf32>
    %24 = vector.extract_strided_slice %21 {offsets = [80, 0], sizes = [1, 128], strides = [1, 1]} : vector<88x128xf32> to vector<1x128xf32>
    %25 = arith.mulf %23, %23 : vector<16x128xf32>
    %cst_3 = arith.constant dense<0.000000e+00> : vector<128xf32>
    %26 = vector.multi_reduction <add>, %25, %cst_3 [0] : vector<16x128xf32> to vector<128xf32>
    %27 = vector.shape_cast %26 : vector<128xf32> to vector<1x128xf32>
    %28 = arith.subf %27, %24 : vector<1x128xf32>
    %cst_4 = arith.constant 5.000000e-01 : f32
    %29 = vector.broadcast %cst_4 : f32 to vector<1x128xf32>
    %30 = arith.mulf %29, %28 : vector<1x128xf32>
    %c0_5 = arith.constant 0 : index
    %c0_6 = arith.constant 0 : index
    %31 = vector.load %arg4[%c0_5, %c0_6] : memref<64x1xf32, #tpu.memory_space<vmem>>, vector<64x1xf32>
    %32 = vector.broadcast %31 : vector<64x1xf32> to vector<64x128xf32>
    %33 = arith.addf %22, %32 : vector<64x128xf32>
    %cst_7 = arith.constant 0.000000e+00 : f32
    %34 = vector.broadcast %cst_7 : f32 to vector<64x128xf32>
    %35 = arith.maximumf %33, %34 : vector<64x128xf32>
    %c0_8 = arith.constant 0 : index
    %c0_9 = arith.constant 0 : index
    %36 = vector.load %arg5[%c0_8, %c0_9] : memref<32x64xbf16, #tpu.memory_space<vmem>>, vector<32x64xbf16>
    %37 = arith.truncf %35 : vector<64x128xf32> to vector<64x128xbf16>
    %cst_10 = arith.constant dense<0.000000e+00> : vector<32x128xf32>
    %38 = tpu.matmul %36, %37, %cst_10 {dimension_numbers = #tpu.dot_dimension_numbers<[1], [0], [0], [1], [0, 0, 1, 1], [], []>} : vector<32x64xbf16>, vector<64x128xbf16>, vector<32x128xf32> -> vector<32x128xf32>
    %c0_11 = arith.constant 0 : index
    %c0_12 = arith.constant 0 : index
    %39 = vector.load %arg6[%c0_11, %c0_12] : memref<32x1xf32, #tpu.memory_space<vmem>>, vector<32x1xf32>
    %40 = vector.broadcast %39 : vector<32x1xf32> to vector<32x128xf32>
    %41 = arith.addf %38, %40 : vector<32x128xf32>
    %cst_13 = arith.constant 0.000000e+00 : f32
    %42 = vector.broadcast %cst_13 : f32 to vector<32x128xf32>
    %43 = arith.maximumf %41, %42 : vector<32x128xf32>
    %c0_14 = arith.constant 0 : index
    %c0_15 = arith.constant 0 : index
    %44 = vector.load %arg7[%c0_14, %c0_15] : memref<1x32xf32, #tpu.memory_space<vmem>>, vector<1x32xf32>
    %cst_16 = arith.constant dense<0.000000e+00> : vector<1x128xf32>
    %45 = tpu.matmul %44, %43, %cst_16 {dimension_numbers = #tpu.dot_dimension_numbers<[1], [0], [0], [1], [0, 0, 1, 1], [], []>} : vector<1x32xf32>, vector<32x128xf32>, vector<1x128xf32> -> vector<1x128xf32>
    %46 = arith.addf %30, %45 : vector<1x128xf32>
    %c0_17 = arith.constant 0 : index
    %c0_18 = arith.constant 0 : index
    %47 = vector.load %arg2[%c0_17, %c0_18] : memref<1x128xf32, #tpu.memory_space<vmem>>, vector<1x128xf32>
    %48 = arith.addf %46, %47 : vector<1x128xf32>
    %c0_19 = arith.constant 0 : index
    %49 = memref.load %arg8[%c0_19] : memref<1xf32, #tpu.memory_space<smem>>
    %50 = vector.broadcast %49 : f32 to vector<1x128xf32>
    %51 = arith.addf %48, %50 : vector<1x128xf32>
    %c0_20 = arith.constant 0 : index
    %c0_21 = arith.constant 0 : index
    %52 = vector.load %arg9[%c0_20, %c0_21] : memref<1x128xf32, #tpu.memory_space<vmem>>, vector<1x128xf32>
    tpu.vector_store %arg9[%c0_20, %c0_21], %51 {strides = array<i32>} : memref<1x128xf32, #tpu.memory_space<vmem>>, vector<1x128xf32>,
    return
  }
  func.func @transform_0(%arg0: i32) -> (i32, i32) {
    %c0_i32 = arith.constant 0 : i32
    %c0_i32_0 = arith.constant 0 : i32
    return %c0_i32, %arg0 : i32, i32
  }
  func.func @transform_1(%arg0: i32) -> (i32, i32) {
    %c0_i32 = arith.constant 0 : i32
    %c0_i32_0 = arith.constant 0 : i32
    return %c0_i32, %arg0 : i32, i32
  }
  func.func @transform_2(%arg0: i32) -> (i32, i32) {
    %c0_i32 = arith.constant 0 : i32
    %c0_i32_0 = arith.constant 0 : i32
    %c0_i32_1 = arith.constant 0 : i32
    return %c0_i32, %c0_i32_0 : i32, i32
  }
  func.func @transform_3(%arg0: i32) -> (i32, i32) {
    %c0_i32 = arith.constant 0 : i32
    %c0_i32_0 = arith.constant 0 : i32
    %c0_i32_1 = arith.constant 0 : i32
    return %c0_i32, %c0_i32_0 : i32, i32
  }
  func.func @transform_4(%arg0: i32) -> (i32, i32) {
    %c0_i32 = arith.constant 0 : i32
    %c0_i32_0 = arith.constant 0 : i32
    %c0_i32_1 = arith.constant 0 : i32
    return %c0_i32, %c0_i32_0 : i32, i32
  }
  func.func @transform_5(%arg0: i32) -> (i32, i32) {
    %c0_i32 = arith.constant 0 : i32
    %c0_i32_0 = arith.constant 0 : i32
    %c0_i32_1 = arith.constant 0 : i32
    return %c0_i32, %c0_i32_0 : i32, i32
  }
  func.func @transform_6(%arg0: i32) -> (i32, i32) {
    %c0_i32 = arith.constant 0 : i32
    %c0_i32_0 = arith.constant 0 : i32
    %c0_i32_1 = arith.constant 0 : i32
    return %c0_i32, %c0_i32_0 : i32, i32
  }
  func.func @transform_7(%arg0: i32) -> i32 {
    %c0_i32 = arith.constant 0 : i32
    %c0_i32_0 = arith.constant 0 : i32
    return %c0_i32 : i32
  }
  func.func @transform_8(%arg0: i32) -> (i32, i32) {
    %c0_i32 = arith.constant 0 : i32
    %c0_i32_0 = arith.constant 0 : i32
    return %c0_i32, %arg0 : i32, i32
  }
}

</mosaic_0001>

<llo_original>
// kernel: tpu_custom_call.1
$region0: #{tpu_custom_call.1}
  #allocation0 [shape = 'u32[]', space=smem, size = 0x4, offset = 0x4, fixed_abs, tag = 'smem constant byte address 0x4 - core index']
  #allocation1 [shape = 'u32[144,128]{1,0:T(1,128)}', space=vmem, size = 0x12000, scoped, tag = 'internal scratch']
  #allocation2 [shape = 'f32[1]{0:T(128)S(6)}', space=smem, size = 0x200, scoped, tag = 'scoped memory for tpu_custom_call.1']
  %s0 = inlined_call_operand.vmem [shape: s32[4,128], index: 0, kind: input, shape index: {}]
  %s1 = inlined_call_operand.vmem [shape: f32[1,128], index: 1, kind: input, shape index: {}]
  %s2 = inlined_call_operand.vmem [shape: bf16[88,128], index: 2, kind: input, shape index: {}]
  %s3 = inlined_call_operand.vmem [shape: f32[64,1], index: 3, kind: input, shape index: {}]
  %s4 = inlined_call_operand.vmem [shape: bf16[32,64], index: 4, kind: input, shape index: {}]
  %s5 = inlined_call_operand.vmem [shape: f32[32,1], index: 5, kind: input, shape index: {}]
  %s6 = inlined_call_operand.vmem [shape: f32[1,32], index: 6, kind: input, shape index: {}]
  %s7 = inlined_call_operand.<no memory space> [shape: f32[1], index: 7, kind: input, shape index: {}]
  %s8 = inlined_call_operand.hbm [shape: f32[1,128], index: 8, kind: output, shape index: {}]
  %s9 = sld [smem:[#allocation0]]
  $region42: #{tpu_custom_call.1} parent=0
    _
  %s11 = ssub.s32 1, %s9
  %s12 = scalar_select 0, %s11, %s9
  %13 = sst [smem:[#allocation2]] %s7
  $region1: #{tpu_custom_call.1} parent=0
    #allocation3 [shape = 'u8[512]{0}', space=vmem, size = 0x400, scoped, tag = 'output window, operand 0, single buffered']
    #allocation4 [shape = 's32[1]{0}', space=sflag, size = 0x4, scoped, tag = 'scoped memory for tpu_custom_call.1']
    %14 = vsyncpa [#allocation4], 0
    // Predicated region
    $region2: #{tpu_custom_call.1} parent=1 // pred_check
      _
    $region3: #{tpu_custom_call.1} parent=1 // pred_check_branch
      %16 = sbr.rel (0) target = $region5
    $region4: #{tpu_custom_call.1} parent=1 // pred_region
      _
    $region5: #{tpu_custom_call.1} parent=1 // pred_fallthru
      _
    // Predicated region
    $region6: #{tpu_custom_call.1} parent=1 // pred_check
      _
    $region7: #{tpu_custom_call.1} parent=1 // pred_check_branch
      %18 = sbr.rel (0) target = $region9
    $region8: #{tpu_custom_call.1} parent=1 // pred_region
      _
    $region9: #{tpu_custom_call.1} parent=1 // pred_fallthru
      _
    // Predicated region
    $region10: #{tpu_custom_call.1} parent=1 // pred_check
      _
    $region11: #{tpu_custom_call.1} parent=1 // pred_check_branch
      %20 = sbr.rel (0) target = $region13
    $region12: #{tpu_custom_call.1} parent=1 // pred_region
      _
    $region13: #{tpu_custom_call.1} parent=1 // pred_fallthru
      _
    // Predicated region
    $region14: #{tpu_custom_call.1} parent=1 // pred_check
      _
    $region15: #{tpu_custom_call.1} parent=1 // pred_check_branch
      %22 = sbr.rel (0) target = $region17
    $region16: #{tpu_custom_call.1} parent=1 // pred_region
      _
    $region17: #{tpu_custom_call.1} parent=1 // pred_fallthru
      _
    // Predicated region
    $region18: #{tpu_custom_call.1} parent=1 // pred_check
      _
    $region19: #{tpu_custom_call.1} parent=1 // pred_check_branch
      %24 = sbr.rel (0) target = $region21
    $region20: #{tpu_custom_call.1} parent=1 // pred_region
      _
    $region21: #{tpu_custom_call.1} parent=1 // pred_fallthru
      _
    // Predicated region
    $region22: #{tpu_custom_call.1} parent=1 // pred_check
      _
    $region23: #{tpu_custom_call.1} parent=1 // pred_check_branch
      %26 = sbr.rel (0) target = $region25
    $region24: #{tpu_custom_call.1} parent=1 // pred_region
      _
    $region25: #{tpu_custom_call.1} parent=1 // pred_fallthru
      _
    // Predicated region
    $region26: #{tpu_custom_call.1} parent=1 // pred_check
      _
    $region27: #{tpu_custom_call.1} parent=1 // pred_check_branch
      %28 = sbr.rel (0) target = $region29
    $region28: #{tpu_custom_call.1} parent=1 // pred_region
      _
    $region29: #{tpu_custom_call.1} parent=1 // pred_fallthru
      _
    // Predicated region
    $region30: #{tpu_custom_call.1} parent=1 // pred_check
      _
    $region31: #{tpu_custom_call.1} parent=1 // pred_check_branch
      %30 = sbr.rel (0) target = $region33
    $region32: #{tpu_custom_call.1} parent=1 // pred_region
      _
    $region33: #{tpu_custom_call.1} parent=1 // pred_fallthru
      _
    %v32 = vld [vmem:[%s0] sm:$0xf]
    %v33 = vlaneseq
    %v34 = vshrl.u32 %v33, 7
    %v35 = vadd.s32 %v34, 8
    %v36 = vadd.s32 %v34, 16
    %v37 = vadd.s32 %v34, 24
    %v38 = vadd.s32 %v34, 32
    %v39 = vadd.s32 %v34, 40
    %v40 = vadd.s32 %v34, 48
    %v41 = vadd.s32 %v34, 56
    %v42 = vadd.s32 %v34, 64
    %v43 = vadd.s32 %v34, 72
    %v44 = vadd.s32 %v34, 80
    %v45 = vadd.s32 %v34, 88
    %v46 = vadd.s32 %v34, 96
    %v47 = vadd.s32 %v34, 104
    %v48 = vadd.s32 %v34, 112
    %v49 = vadd.s32 %v34, 120
    %v50 = vlaneseq
    %v51 = vshrl.u32 %v50, 7
    %v52 = vsub.s32 0, %v51
    %v53 = vrot.slane %v32, %v52
    %vm54 = vcmp.eq.s32.totalorder %v34, %v53
    %vm55 = vcmp.eq.s32.totalorder %v35, %v53
    %vm56 = vcmp.eq.s32.totalorder %v36, %v53
    %vm57 = vcmp.eq.s32.totalorder %v37, %v53
    %vm58 = vcmp.eq.s32.totalorder %v38, %v53
    %vm59 = vcmp.eq.s32.totalorder %v39, %v53
    %vm60 = vcmp.eq.s32.totalorder %v40, %v53
    %vm61 = vcmp.eq.s32.totalorder %v41, %v53
    %vm62 = vcmp.eq.s32.totalorder %v42, %v53
    %vm63 = vcmp.eq.s32.totalorder %v43, %v53
    %vm64 = vcmp.eq.s32.totalorder %v44, %v53
    %vm65 = vcmp.eq.s32.totalorder %v45, %v53
    %vm66 = vcmp.eq.s32.totalorder %v46, %v53
    %vm67 = vcmp.eq.s32.totalorder %v47, %v53
    %vm68 = vcmp.eq.s32.totalorder %v48, %v53
    %vm69 = vcmp.eq.s32.totalorder %v49, %v53
    %v70 = vlaneseq
    %v71 = vshrl.u32 %v70, 7
    %v72 = vsub.s32 1, %v71
    %v73 = vrot.slane %v32, %v72
    %vm74 = vcmp.eq.s32.totalorder %v34, %v73
    %vm75 = vcmp.eq.s32.totalorder %v35, %v73
    %vm76 = vcmp.eq.s32.totalorder %v36, %v73
    %vm77 = vcmp.eq.s32.totalorder %v37, %v73
    %vm78 = vcmp.eq.s32.totalorder %v38, %v73
    %vm79 = vcmp.eq.s32.totalorder %v39, %v73
    %vm80 = vcmp.eq.s32.totalorder %v40, %v73
    %vm81 = vcmp.eq.s32.totalorder %v41, %v73
    %vm82 = vcmp.eq.s32.totalorder %v42, %v73
    %vm83 = vcmp.eq.s32.totalorder %v43, %v73
    %vm84 = vcmp.eq.s32.totalorder %v44, %v73
    %vm85 = vcmp.eq.s32.totalorder %v45, %v73
    %vm86 = vcmp.eq.s32.totalorder %v46, %v73
    %vm87 = vcmp.eq.s32.totalorder %v47, %v73
    %vm88 = vcmp.eq.s32.totalorder %v48, %v73
    %vm89 = vcmp.eq.s32.totalorder %v49, %v73
    %vm90 = vmor %vm54, %vm74
    %vm91 = vmor %vm55, %vm75
    %vm92 = vmor %vm56, %vm76
    %vm93 = vmor %vm57, %vm77
    %vm94 = vmor %vm58, %vm78
    %vm95 = vmor %vm59, %vm79
    %vm96 = vmor %vm60, %vm80
    %vm97 = vmor %vm61, %vm81
    %vm98 = vmor %vm62, %vm82
    %vm99 = vmor %vm63, %vm83
    %vm100 = vmor %vm64, %vm84
    %vm101 = vmor %vm65, %vm85
    %vm102 = vmor %vm66, %vm86
    %vm103 = vmor %vm67, %vm87
    %vm104 = vmor %vm68, %vm88
    %vm105 = vmor %vm69, %vm89
    %v106 = vlaneseq
    %v107 = vshrl.u32 %v106, 7
    %v108 = vsub.s32 2, %v107
    %v109 = vrot.slane %v32, %v108
    %vm110 = vcmp.eq.s32.totalorder %v34, %v109
    %vm111 = vcmp.eq.s32.totalorder %v35, %v109
    %vm112 = vcmp.eq.s32.totalorder %v36, %v109
    %vm113 = vcmp.eq.s32.totalorder %v37, %v109
    %vm114 = vcmp.eq.s32.totalorder %v38, %v109
    %vm115 = vcmp.eq.s32.totalorder %v39, %v109
    %vm116 = vcmp.eq.s32.totalorder %v40, %v109
    %vm117 = vcmp.eq.s32.totalorder %v41, %v109
    %vm118 = vcmp.eq.s32.totalorder %v42, %v109
    %vm119 = vcmp.eq.s32.totalorder %v43, %v109
    %vm120 = vcmp.eq.s32.totalorder %v44, %v109
    %vm121 = vcmp.eq.s32.totalorder %v45, %v109
    %vm122 = vcmp.eq.s32.totalorder %v46, %v109
    %vm123 = vcmp.eq.s32.totalorder %v47, %v109
    %vm124 = vcmp.eq.s32.totalorder %v48, %v109
    %vm125 = vcmp.eq.s32.totalorder %v49, %v109
    %vm126 = vmor %vm90, %vm110
    %vm127 = vmor %vm91, %vm111
    %vm128 = vmor %vm92, %vm112
    %vm129 = vmor %vm93, %vm113
    %vm130 = vmor %vm94, %vm114
    %vm131 = vmor %vm95, %vm115
    %vm132 = vmor %vm96, %vm116
    %vm133 = vmor %vm97, %vm117
    %vm134 = vmor %vm98, %vm118
    %vm135 = vmor %vm99, %vm119
    %vm136 = vmor %vm100, %vm120
    %vm137 = vmor %vm101, %vm121
    %vm138 = vmor %vm102, %vm122
    %vm139 = vmor %vm103, %vm123
    %vm140 = vmor %vm104, %vm124
    %vm141 = vmor %vm105, %vm125
    %v142 = vlaneseq
    %v143 = vshrl.u32 %v142, 7
    %v144 = vsub.s32 3, %v143
    %v145 = vrot.slane %v32, %v144
    %vm146 = vcmp.eq.s32.totalorder %v34, %v145
    %vm147 = vcmp.eq.s32.totalorder %v35, %v145
    %vm148 = vcmp.eq.s32.totalorder %v36, %v145
    %vm149 = vcmp.eq.s32.totalorder %v37, %v145
    %vm150 = vcmp.eq.s32.totalorder %v38, %v145
    %vm151 = vcmp.eq.s32.totalorder %v39, %v145
    %vm152 = vcmp.eq.s32.totalorder %v40, %v145
    %vm153 = vcmp.eq.s32.totalorder %v41, %v145
    %vm154 = vcmp.eq.s32.totalorder %v42, %v145
    %vm155 = vcmp.eq.s32.totalorder %v43, %v145
    %vm156 = vcmp.eq.s32.totalorder %v44, %v145
    %vm157 = vcmp.eq.s32.totalorder %v45, %v145
    %vm158 = vcmp.eq.s32.totalorder %v46, %v145
    %vm159 = vcmp.eq.s32.totalorder %v47, %v145
    %vm160 = vcmp.eq.s32.totalorder %v48, %v145
    %vm161 = vcmp.eq.s32.totalorder %v49, %v145
    %vm162 = vmor %vm126, %vm146
    %vm163 = vmor %vm127, %vm147
    %vm164 = vmor %vm128, %vm148
    %vm165 = vmor %vm129, %vm149
    %vm166 = vmor %vm130, %vm150
    %vm167 = vmor %vm131, %vm151
    %vm168 = vmor %vm132, %vm152
    %vm169 = vmor %vm133, %vm153
    %vm170 = vmor %vm134, %vm154
    %vm171 = vmor %vm135, %vm155
    %vm172 = vmor %vm136, %vm156
    %vm173 = vmor %vm137, %vm157
    %vm174 = vmor %vm138, %vm158
    %vm175 = vmor %vm139, %vm159
    %vm176 = vmor %vm140, %vm160
    %vm177 = vmor %vm141, %vm161
    %v178 = vsel %vm162, 1, 0
    %v179 = vsel %vm163, 1, 0
    %v180 = vsel %vm164, 1, 0
    %v181 = vsel %vm165, 1, 0
    %v182 = vsel %vm166, 1, 0
    %v183 = vsel %vm167, 1, 0
    %v184 = vsel %vm168, 1, 0
    %v185 = vsel %vm169, 1, 0
    %v186 = vsel %vm170, 1, 0
    %v187 = vsel %vm171, 1, 0
    %v188 = vsel %vm172, 1, 0
    %v189 = vsel %vm173, 1, 0
    %v190 = vsel %vm174, 1, 0
    %v191 = vsel %vm175, 1, 0
    %v192 = vsel %vm176, 1, 0
    %v193 = vsel %vm177, 1, 0
    %v194 = vcvt.s32.f32 %v178
    %v195 = vcvt.s32.f32 %v179
    %v196 = vcvt.s32.f32 %v180
    %v197 = vcvt.s32.f32 %v181
    %v198 = vcvt.s32.f32 %v182
    %v199 = vcvt.s32.f32 %v183
    %v200 = vcvt.s32.f32 %v184
    %v201 = vcvt.s32.f32 %v185
    %v202 = vcvt.s32.f32 %v186
    %v203 = vcvt.s32.f32 %v187
    %v204 = vcvt.s32.f32 %v188
    %v205 = vcvt.s32.f32 %v189
    %v206 = vcvt.s32.f32 %v190
    %v207 = vcvt.s32.f32 %v191
    %v208 = vcvt.s32.f32 %v192
    %v209 = vcvt.s32.f32 %v193
    %v210 = vpack.c.bf16 %v195, %v194
    %v211 = vpack.c.bf16 %v197, %v196
    %v212 = vpack.c.bf16 %v199, %v198
    %v213 = vpack.c.bf16 %v201, %v200
    %v214 = vpack.c.bf16 %v203, %v202
    %v215 = vpack.c.bf16 %v205, %v204
    %v216 = vpack.c.bf16 %v207, %v206
    %v217 = vpack.c.bf16 %v209, %v208
    %v218 = vld [vmem:[%s2] sm:$0xf]
    %v219 = vld [vmem:[%s2 + $0x4] sm:$0xf]
    %v220 = vld [vmem:[%s2 + $0x8] sm:$0xf]
    %v221 = vld [vmem:[%s2 + $0xc] sm:$0xf]
    %v222 = vld [vmem:[%s2 + $0x10] sm:$0xf]
    %v223 = vld [vmem:[%s2 + $0x14] sm:$0xf]
    %v224 = vld [vmem:[%s2 + $0x18] sm:$0xf]
    %v225 = vld [vmem:[%s2 + $0x1c] sm:$0xf]
    %v226 = vld [vmem:[%s2 + $0x20] sm:$0xf]
    %v227 = vld [vmem:[%s2 + $0x24] sm:$0xf]
    %v228 = vld [vmem:[%s2 + $0x28] sm:$0xf]
    %v240 = vunpack.c.l.b16 %v218
    %v241 = vunpack.c.l.b16 %v219
    %v242 = vunpack.c.l.b16 %v220
    %v243 = vunpack.c.l.b16 %v221
    %v244 = vunpack.c.l.b16 %v222
    %v245 = vunpack.c.l.b16 %v223
    %v246 = vunpack.c.l.b16 %v224
    %v247 = vunpack.c.l.b16 %v225
    %v248 = vunpack.c.l.b16 %v226
    %v249 = vunpack.c.l.b16 %v227
    %v250 = vunpack.c.l.b16 %v228
    %v251 = vpack.c.b16 %v241, %v240
    %v252 = vpack.c.b16 %v243, %v242
    %v253 = vpack.c.b16 %v245, %v244
    %v254 = vpack.c.b16 %v247, %v246
    %v255 = vpack.c.b16 %v249, %v248
    %v256 = vpack.c.b16 %v250, %v250
    %263 = vmatprep.subr.bf16.mxu0 0
    %264 = vmatpush1.bf16.msra.mxu0 %v210
    %265 = vmatprep.subr.bf16.mxu0 0
    %266 = vmatpush1.bf16.msra.mxu0 %v211
    %267 = vmatprep.subr.bf16.mxu0 0
    %268 = vmatpush1.bf16.msra.mxu0 %v212
    %269 = vmatprep.subr.bf16.mxu0 0
    %270 = vmatpush1.bf16.msra.mxu0 %v213
    %271 = vmatprep.subr.bf16.mxu0 0
    %272 = vmatpush1.bf16.msra.mxu0 %v214
    %273 = vmatprep.subr.bf16.mxu0 0
    %274 = vmatpush1.bf16.msra.mxu0 %v215
    %275 = vmatprep.subr.bf16.mxu0 0
    %276 = vmatpush1.bf16.msra.mxu0 %v216
    %277 = vmatprep.subr.bf16.mxu0 0
    %278 = vmatpush1.bf16.msra.mxu0 %v217
    %279 = vmatprep.subr.bf16.mxu0 0
    %280 = vmatpush1.bf16.msra.mxu0 0
    %281 = vmatprep.subr.bf16.mxu0 0
    %282 = vmatpush1.bf16.msra.mxu0 0
    %283 = vmatprep.subr.bf16.mxu0 0
    %284 = vmatpush1.bf16.msra.mxu0 0
    %285 = vmatprep.subr.bf16.mxu0 0
    %286 = vmatpush1.bf16.msra.mxu0 0
    %287 = vmatprep.subr.bf16.mxu0 0
    %288 = vmatpush1.bf16.msra.mxu0 0
    %289 = vmatprep.subr.bf16.mxu0 0
    %290 = vmatpush1.bf16.msra.mxu0 0
    %291 = vmatprep.subr.bf16.mxu0 0
    %292 = vmatpush1.bf16.msra.mxu0 0
    %293 = vmatprep.subr.bf16.mxu0 0
    %294 = vmatpush1.bf16.msra.mxu0 0
    %295 = vmatprep.mubr.bf16.mxu0 0
    %296 = vmatmul.mubr.bf16.gmra.mrb[0].mxu0 %v251
    %v297 = vpop.f32.mrb[0].mxu0
    %v298 = vadd.f32 0.0, %v297
    %v299 = vpop.f32.mrb[0].mxu0
    %v300 = vpop.f32.mrb[0].mxu0
    %v301 = vadd.f32 0.0, %v300
    %v302 = vpop.f32.mrb[0].mxu0
    %303 = vmatprep.mubr.bf16.mxu0 0
    %304 = vmatmul.mubr.bf16.gmra.mrb[0].mxu0 %v252
    %v305 = vpop.f32.mrb[0].mxu0
    %v306 = vadd.f32 0.0, %v305
    %v307 = vpop.f32.mrb[0].mxu0
    %v308 = vpop.f32.mrb[0].mxu0
    %v309 = vadd.f32 0.0, %v308
    %v310 = vpop.f32.mrb[0].mxu0
    %311 = vmatprep.mubr.bf16.mxu0 0
    %312 = vmatmul.mubr.bf16.gmra.mrb[0].mxu0 %v253
    %v313 = vpop.f32.mrb[0].mxu0
    %v314 = vadd.f32 0.0, %v313
    %v315 = vpop.f32.mrb[0].mxu0
    %v316 = vpop.f32.mrb[0].mxu0
    %v317 = vadd.f32 0.0, %v316
    %v318 = vpop.f32.mrb[0].mxu0
    %319 = vmatprep.mubr.bf16.mxu0 0
    %320 = vmatmul.mubr.bf16.gmra.mrb[0].mxu0 %v254
    %v321 = vpop.f32.mrb[0].mxu0
    %v322 = vadd.f32 0.0, %v321
    %v323 = vpop.f32.mrb[0].mxu0
    %v324 = vpop.f32.mrb[0].mxu0
    %v325 = vadd.f32 0.0, %v324
    %v326 = vpop.f32.mrb[0].mxu0
    %327 = vmatprep.mubr.bf16.mxu0 0
    %328 = vmatmul.mubr.bf16.gmra.mrb[0].mxu0 %v255
    %v329 = vpop.f32.mrb[0].mxu0
    %v330 = vadd.f32 0.0, %v329
    %v331 = vpop.f32.mrb[0].mxu0
    %v332 = vpop.f32.mrb[0].mxu0
    %v333 = vadd.f32 0.0, %v332
    %v334 = vpop.f32.mrb[0].mxu0
    %335 = vmatprep.mubr.bf16.mxu0 0
    %336 = vmatmul.mubr.bf16.gmra.mrb[0].mxu0 %v256
    %v337 = vpop.f32.mrb[0].mxu0
    %v338 = vadd.f32 0.0, %v337
    %v339 = vpop.f32.mrb[0].mxu0
    %v340 = vpop.f32.mrb[0].mxu0
    %v341 = vpop.f32.mrb[0].mxu0
    %342 = vdwg.mxu0
    %v343 = vmul.f32 %v330, %v330
    %v344 = vmul.f32 %v333, %v333
    %v345 = vadd.f32 %v343, %v344
    %v346 = vrot.slane %v345, 4
    %v347 = vadd.f32 %v345, %v346
    %v348 = vrot.slane %v347, 2
    %v349 = vadd.f32 %v347, %v348
    %v350 = vrot.slane %v349, 1
    %v351 = vadd.f32 %v349, %v350
    %v352 = vsub.f32 %v351, %v338
    %v353 = vmul.f32 %v352, 0.5
    %v354 = vld [vmem:[%s3] sm:$0xff]
    %v355 = vld [vmem:[%s3 + $0x8] sm:$0xff]
    %v356 = vld [vmem:[%s3 + $0x10] sm:$0xff]
    %v357 = vld [vmem:[%s3 + $0x18] sm:$0xff]
    %v358 = vld [vmem:[%s3 + $0x20] sm:$0xff]
    %v359 = vld [vmem:[%s3 + $0x28] sm:$0xff]
    %v360 = vld [vmem:[%s3 + $0x30] sm:$0xff]
    %v361 = vld [vmem:[%s3 + $0x38] sm:$0xff]
    %363 = vset.pattern.permute.xlu0 0
    %364 = vperm.xlu0 %363, %v354
    %v365 = vpop.permute.xlu0 %364
    %368 = vset.pattern.permute.xlu0 0
    %369 = vperm.xlu0 %368, %v355
    %v370 = vpop.permute.xlu0 %369
    %373 = vset.pattern.permute.xlu0 0
    %374 = vperm.xlu0 %373, %v356
    %v375 = vpop.permute.xlu0 %374
    %378 = vset.pattern.permute.xlu0 0
    %379 = vperm.xlu0 %378, %v357
    %v380 = vpop.permute.xlu0 %379
    %383 = vset.pattern.permute.xlu0 0
    %384 = vperm.xlu0 %383, %v358
    %v385 = vpop.permute.xlu0 %384
    %388 = vset.pattern.permute.xlu0 0
    %389 = vperm.xlu0 %388, %v359
    %v390 = vpop.permute.xlu0 %389
    %393 = vset.pattern.permute.xlu0 0
    %394 = vperm.xlu0 %393, %v360
    %v395 = vpop.permute.xlu0 %394
    %398 = vset.pattern.permute.xlu0 0
    %399 = vperm.xlu0 %398, %v361
    %v400 = vpop.permute.xlu0 %399
    %v402 = vadd.f32 %v298, %v365
    %v403 = vadd.f32 %v301, %v370
    %v404 = vadd.f32 %v306, %v375
    %v405 = vadd.f32 %v309, %v380
    %v406 = vadd.f32 %v314, %v385
    %v407 = vadd.f32 %v317, %v390
    %v408 = vadd.f32 %v322, %v395
    %v409 = vadd.f32 %v325, %v400
    %v410 = vmax.f32 %v402, 0.0
    %v411 = vmax.f32 %v403, 0.0
    %v412 = vmax.f32 %v404, 0.0
    %v413 = vmax.f32 %v405, 0.0
    %v414 = vmax.f32 %v406, 0.0
    %v415 = vmax.f32 %v407, 0.0
    %v416 = vmax.f32 %v408, 0.0
    %v417 = vmax.f32 %v409, 0.0
    %v418 = vld [vmem:[%s4] sm:$0xf]
    %v419 = vld [vmem:[%s4 + $0x4] sm:$0xf]
    %v420 = vld [vmem:[%s4 + $0x8] sm:$0xf]
    %v421 = vld [vmem:[%s4 + $0xc] sm:$0xf]
    %v422 = vpack.c.bf16 %v411, %v410
    %v423 = vpack.c.bf16 %v413, %v412
    %v424 = vpack.c.bf16 %v415, %v414
    %v425 = vpack.c.bf16 %v417, %v416
    %v426 = vld [vmem:[%s5] sm:$0xff]
    %v427 = vld [vmem:[%s5 + $0x8] sm:$0xff]
    %v428 = vld [vmem:[%s5 + $0x10] sm:$0xff]
    %v429 = vld [vmem:[%s5 + $0x18] sm:$0xff]
    %431 = vset.pattern.permute.xlu0 0
    %432 = vperm.xlu0 %431, %v426
    %v433 = vpop.permute.xlu0 %432
    %436 = vset.pattern.permute.xlu0 0
    %437 = vperm.xlu0 %436, %v427
    %v438 = vpop.permute.xlu0 %437
    %441 = vset.pattern.permute.xlu0 0
    %442 = vperm.xlu0 %441, %v428
    %v443 = vpop.permute.xlu0 %442
    %446 = vset.pattern.permute.xlu0 0
    %447 = vperm.xlu0 %446, %v429
    %v448 = vpop.permute.xlu0 %447
    %v454 = vunpack.c.l.b16 %v418
    %v455 = vunpack.c.l.b16 %v419
    %v456 = vunpack.c.l.b16 %v420
    %v457 = vunpack.c.l.b16 %v421
    %v458 = vpack.c.b16 %v455, %v454
    %v459 = vpack.c.b16 %v457, %v456
    %vm460 = vcmask 523264
    %v462 = vsel %vm460, %v458, 0
    %v465 = vsel %vm460, %v459, 0
    %467 = vmatprep.subr.bf16.mxu0 0
    %468 = vmatpush1.bf16.msra.mxu0 %v422
    %469 = vmatprep.subr.bf16.mxu0 0
    %470 = vmatpush1.bf16.msra.mxu0 %v423
    %471 = vmatprep.subr.bf16.mxu0 0
    %472 = vmatpush1.bf16.msra.mxu0 %v424
    %473 = vmatprep.subr.bf16.mxu0 0
    %474 = vmatpush1.bf16.msra.mxu0 %v425
    %475 = vmatprep.subr.bf16.mxu0 0
    %476 = vmatpush1.bf16.msra.mxu0 0
    %477 = vmatprep.subr.bf16.mxu0 0
    %478 = vmatpush1.bf16.msra.mxu0 0
    %479 = vmatprep.subr.bf16.mxu0 0
    %480 = vmatpush1.bf16.msra.mxu0 0
    %481 = vmatprep.subr.bf16.mxu0 0
    %482 = vmatpush1.bf16.msra.mxu0 0
    %483 = vmatprep.subr.bf16.mxu0 0
    %484 = vmatpush1.bf16.msra.mxu0 0
    %485 = vmatprep.subr.bf16.mxu0 0
    %486 = vmatpush1.bf16.msra.mxu0 0
    %487 = vmatprep.subr.bf16.mxu0 0
    %488 = vmatpush1.bf16.msra.mxu0 0
    %489 = vmatprep.subr.bf16.mxu0 0
    %490 = vmatpush1.bf16.msra.mxu0 0
    %491 = vmatprep.subr.bf16.mxu0 0
    %492 = vmatpush1.bf16.msra.mxu0 0
    %493 = vmatprep.subr.bf16.mxu0 0
    %494 = vmatpush1.bf16.msra.mxu0 0
    %495 = vmatprep.subr.bf16.mxu0 0
    %496 = vmatpush1.bf16.msra.mxu0 0
    %497 = vmatprep.subr.bf16.mxu0 0
    %498 = vmatpush1.bf16.msra.mxu0 0
    %499 = vmatprep.mubr.bf16.mxu0 0
    %500 = vmatmul.mubr.bf16.gmra.mrb[0].mxu0 %v462
    %v501 = vpop.f32.mrb[0].mxu0
    %v502 = vadd.f32 %v433, %v501
    %v503 = vpop.f32.mrb[0].mxu0
    %v504 = vpop.f32.mrb[0].mxu0
    %v505 = vadd.f32 %v438, %v504
    %v506 = vpop.f32.mrb[0].mxu0
    %507 = vmatprep.mubr.bf16.mxu0 0
    %508 = vmatmul.mubr.bf16.gmra.mrb[0].mxu0 %v465
    %v509 = vpop.f32.mrb[0].mxu0
    %v510 = vadd.f32 %v443, %v509
    %v511 = vpop.f32.mrb[0].mxu0
    %v512 = vpop.f32.mrb[0].mxu0
    %v513 = vadd.f32 %v448, %v512
    %v514 = vpop.f32.mrb[0].mxu0
    %515 = vdwg.mxu0
    %v516 = vmax.f32 %v502, 0.0
    %v517 = vmax.f32 %v505, 0.0
    %v518 = vmax.f32 %v510, 0.0
    %v519 = vmax.f32 %v513, 0.0
    %v520 = vld [vmem:[%s6] sm:$0x1]
    %vm521 = vcmask 261120
    %v523 = vsel %vm521, %v520, 0
    %525 = vmatprep.subr.mxu0 0.0
    %526 = vmatpush1.msra.mxu0 %v516
    %527 = vmatprep.subr.mxu0 0.0
    %528 = vmatpush1.msra.mxu0 %v517
    %529 = vmatprep.subr.mxu0 0.0
    %530 = vmatpush1.msra.mxu0 %v518
    %531 = vmatprep.subr.mxu0 0.0
    %532 = vmatpush1.msra.mxu0 %v519
    %533 = vmatprep.subr.mxu0 0.0
    %534 = vmatpush1.msra.mxu0 0.0
    %535 = vmatprep.subr.mxu0 0.0
    %536 = vmatpush1.msra.mxu0 0.0
    %537 = vmatprep.subr.mxu0 0.0
    %538 = vmatpush1.msra.mxu0 0.0
    %539 = vmatprep.subr.mxu0 0.0
    %540 = vmatpush1.msra.mxu0 0.0
    %541 = vmatprep.subr.mxu0 0.0
    %542 = vmatpush1.msra.mxu0 0.0
    %543 = vmatprep.subr.mxu0 0.0
    %544 = vmatpush1.msra.mxu0 0.0
    %545 = vmatprep.subr.mxu0 0.0
    %546 = vmatpush1.msra.mxu0 0.0
    %547 = vmatprep.subr.mxu0 0.0
    %548 = vmatpush1.msra.mxu0 0.0
    %549 = vmatprep.subr.mxu0 0.0
    %550 = vmatpush1.msra.mxu0 0.0
    %551 = vmatprep.subr.mxu0 0.0
    %552 = vmatpush1.msra.mxu0 0.0
    %553 = vmatprep.subr.mxu0 0.0
    %554 = vmatpush1.msra.mxu0 0.0
    %555 = vmatprep.subr.mxu0 0.0
    %556 = vmatpush1.msra.mxu0 0.0
    %557 = vmatprep.subr.mxu0 0.0
    %558 = vmatpush1.msra.mxu0 0.0
    %559 = vmatprep.subr.mxu0 0.0
    %560 = vmatpush1.msra.mxu0 0.0
    %561 = vmatprep.subr.mxu0 0.0
    %562 = vmatpush1.msra.mxu0 0.0
    %563 = vmatprep.subr.mxu0 0.0
    %564 = vmatpush1.msra.mxu0 0.0
    %565 = vmatprep.subr.mxu0 0.0
    %566 = vmatpush1.msra.mxu0 0.0
    %567 = vmatprep.subr.mxu0 0.0
    %568 = vmatpush1.msra.mxu0 0.0
    %569 = vmatprep.subr.mxu0 0.0
    %570 = vmatpush1.msra.mxu0 0.0
    %571 = vmatprep.subr.mxu0 0.0
    %572 = vmatpush1.msra.mxu0 0.0
    %573 = vmatprep.subr.mxu0 0.0
    %574 = vmatpush1.msra.mxu0 0.0
    %575 = vmatprep.subr.mxu0 0.0
    %576 = vmatpush1.msra.mxu0 0.0
    %577 = vmatprep.subr.mxu0 0.0
    %578 = vmatpush1.msra.mxu0 0.0
    %579 = vmatprep.subr.mxu0 0.0
    %580 = vmatpush1.msra.mxu0 0.0
    %581 = vmatprep.subr.mxu0 0.0
    %582 = vmatpush1.msra.mxu0 0.0
    %583 = vmatprep.subr.mxu0 0.0
    %584 = vmatpush1.msra.mxu0 0.0
    %585 = vmatprep.subr.mxu0 0.0
    %586 = vmatpush1.msra.mxu0 0.0
    %587 = vmatprep.subr.mxu0 0.0
    %588 = vmatpush1.msra.mxu0 0.0
    %589 = vmatprep.mubr.f32.mxu0 0.0
    %590 = vmatmul.mubr.f32.gmra.mrb[0].mxu0 %v523
    %v591 = vpop.f32.mrb[0].mxu0
    %v592 = vadd.f32 0.0, %v591
    %v593 = vpop.f32.mrb[0].mxu0
    %594 = vdwg.mxu0
    %v595 = vadd.f32 %v353, %v592
    %v596 = vld [vmem:[%s1] sm:$0x1]
    %v597 = vadd.f32 %v595, %v596
    %s598 = sld [smem:[#allocation2]]
    %v599 = vstv %s598
    %v600 = vadd.f32 %v597, %v599
    %601 = vst [vmem:[#allocation3] sm:$0x1] %v600
    // Predicated region
    $region34: #{tpu_custom_call.1} parent=1 // pred_check
      _
    $region35: #{tpu_custom_call.1} parent=1 // pred_check_branch
      %603 = sbr.rel (0) target = $region37
    $region36: #{tpu_custom_call.1} parent=1 // pred_region
      %s605 = ssub.s32 16, 16
      %606 = vsyncadd [#allocation4], %s605
      %s608 = sshll.u32 [#allocation3], 4
      %s609 = int_to_ptr.vmem [resolvable:$true] %s608
      %611 = dma.vmem_to_hbm [thread:$0]  %s609, 16, %s8, [#allocation4]
    $region37: #{tpu_custom_call.1} parent=1 // pred_fallthru
      _
    // Predicated region
    $region38: #{tpu_custom_call.1} parent=1 // pred_check
      _
    $region39: #{tpu_custom_call.1} parent=1 // pred_check_branch
      %613 = sbr.rel (0) target = $region41
    $region40: #{tpu_custom_call.1} parent=1 // pred_region
      %614 = dma.done [#allocation4], 16
    $region41: #{tpu_custom_call.1} parent=1 // pred_fallthru
      _
    %615 = vsyncpa [#allocation4], 1

</llo_original>
